<compile_context>
chip_gen: v6e
topology: v6e:2x2x1
jax: 0.10.0
libtpu: 0.0.40
codegen_flags: <defaults>
</compile_context>

<pallas_src>
import functools

import jax
import jax.numpy as jnp
from jax.experimental import pallas as pl
from jax.experimental.pallas import tpu as pltpu


def _ce_kernel(logits_ref, labels_ref, loss_ref, m_sc, l_sc, tgt_sc, *,
               total_rows, total_cols, block_rows, block_cols):
    # logits_ref: (TB, TC) float, labels_ref: (TB, 1) int32, loss_ref: (TB, 1) f32
    # m_sc/l_sc/tgt_sc: (TB, 1) f32 online-logsumexp state (persist across class tiles)
    ri = pl.program_id(0)
    ci = pl.program_id(1)
    n_col = pl.num_programs(1)

    # Reset per-row state at the start of every row tile (class axis is innermost).
    @pl.when(ci == 0)
    def _():
        m_sc[...] = jnp.full_like(m_sc, -jnp.inf)
        l_sc[...] = jnp.zeros_like(l_sc)
        tgt_sc[...] = jnp.zeros_like(tgt_sc)

    x = logits_ref[...].astype(jnp.float32)                       # (TB, TC)
    labels = labels_ref[...]                                      # (TB, 1) int32

    # Global class index of each lane; mask padded class columns of the last tile.
    col = jax.lax.broadcasted_iota(jnp.int32, x.shape, 1) + ci * block_cols
    x_valid = jnp.where(col < total_cols, x, -jnp.inf)

    # Online logsumexp update (exp goes to the EUP -> nearly free slot-wise).
    m_prev = m_sc[...]
    m_new = jnp.maximum(m_prev, jnp.max(x_valid, axis=1, keepdims=True))
    alpha = jnp.exp(m_prev - m_new)                               # 0 on the first tile
    l_sc[...] = alpha * l_sc[...] + jnp.sum(jnp.exp(x_valid - m_new),
                                            axis=1, keepdims=True)
    m_sc[...] = m_new

    # Gather x[row, label]: the label falls in exactly one class tile.
    tgt_sc[...] += jnp.sum(jnp.where(col == labels, x, 0.0), axis=1, keepdims=True)

    # Finalize: loss_i = m_i + log(l_i) - x_i[y_i]; mask padded tail rows.
    @pl.when(ci == n_col - 1)
    def _():
        loss = m_sc[...] + jnp.log(l_sc[...]) - tgt_sc[...]       # (TB, 1)
        row = jax.lax.broadcasted_iota(jnp.int32, loss.shape, 0) + ri * block_rows
        loss_ref[...] = jnp.where(row < total_rows, loss, 0.0)


def cross_entropy_loss(predicts, targets, *, block_rows=None, block_cols=None):
    """predicts: (B, C) float array, targets: (B,) int array of class indices.
    Returns a scalar float32 loss (mean over batch), matching the PyTorch module."""
    B, C = predicts.shape
    labels = targets.astype(jnp.int32).reshape(B, 1)
    itemsize = jnp.dtype(predicts.dtype).itemsize

    if block_cols is None:
        # Full class dim as one block when it comfortably fits; otherwise tile by 2048
        # (multiple of 128 lanes) and rely on the online logsumexp.
        block_cols = C if C <= 4096 else 2048
    if block_rows is None:
        # ~2 MiB of logits per pipeline buffer, multiple of 8 sublanes, capped at 512.
        tb = (2 * 1024 * 1024) // max(1, block_cols * itemsize)
        tb = tb - (tb % 8)
        tb = max(8, min(512, tb))
        block_rows = B if B <= tb else tb

    n_row = pl.cdiv(B, block_rows)
    n_col = pl.cdiv(C, block_cols)
    padded_rows = n_row * block_rows

    kernel = functools.partial(_ce_kernel, total_rows=B, total_cols=C,
                               block_rows=block_rows, block_cols=block_cols)

    per_row = pl.pallas_call(
        kernel,
        out_shape=jax.ShapeDtypeStruct((padded_rows, 1), jnp.float32),
        grid=(n_row, n_col),
        in_specs=[
            pl.BlockSpec((block_rows, block_cols), lambda ri, ci: (ri, ci)),  # logits
            pl.BlockSpec((block_rows, 1), lambda ri, ci: (ri, 0)),            # labels
        ],
        # Output block depends only on the row tile -> resident across class tiles.
        out_specs=pl.BlockSpec((block_rows, 1), lambda ri, ci: (ri, 0)),
        scratch_shapes=[
            pltpu.VMEM((block_rows, 1), jnp.float32),   # running max m
            pltpu.VMEM((block_rows, 1), jnp.float32),   # running sum-exp l
            pltpu.VMEM((block_rows, 1), jnp.float32),   # gathered target logit
        ],
        compiler_params=pltpu.CompilerParams(
            dimension_semantics=("parallel", "arbitrary"),
            vmem_limit_bytes=32 * 1024 * 1024,
        ),
    )(predicts, labels)

    # Padded tail rows were written as 0 in-kernel; mean over the true batch size.
    return jnp.sum(per_row) / jnp.float32(B)


def _reference(predicts, targets):
    C = predicts.shape[1]
    probs = jax.nn.softmax(predicts.astype(jnp.float32), axis=1)
    one_hot = jax.nn.one_hot(targets, C, dtype=jnp.float32)
    return jnp.mean(-jnp.log(jnp.sum(probs * one_hot, axis=1)))


if __name__ == "__main__":
    key = jax.random.PRNGKey(0)
    k1, k2, k3, k4, k5, k6 = jax.random.split(key, 6)

    # 1) Small case: single row tile, single class tile.
    B, C = 8, 32
    predicts = jax.random.normal(k1, (B, C), dtype=jnp.float32)
    targets = jax.random.randint(k2, (B,), 0, C, dtype=jnp.int32)
    loss = cross_entropy_loss(predicts, targets)
    jax.block_until_ready(loss)
    ref = _reference(predicts, targets)
    assert jnp.allclose(loss, ref, rtol=1e-5, atol=1e-5), (loss, ref)

    # 2) Ragged batch: multi row tile with a padded tail (row masking + accumulation).
    B2, C2 = 13, 32
    predicts2 = jax.random.normal(k3, (B2, C2), dtype=jnp.float32)
    targets2 = jax.random.randint(k4, (B2,), 0, C2, dtype=jnp.int32)
    loss2 = cross_entropy_loss(predicts2, targets2, block_rows=8)
    jax.block_until_ready(loss2)
    ref2 = _reference(predicts2, targets2)
    assert jnp.allclose(loss2, ref2, rtol=1e-5, atol=1e-5), (loss2, ref2)

    # 3) Class-axis tiling: ragged C (online logsumexp + column masking path).
    B3, C3 = 12, 300
    predicts3 = jax.random.normal(k5, (B3, C3), dtype=jnp.float32)
    targets3 = jax.random.randint(k6, (B3,), 0, C3, dtype=jnp.int32)
    loss3 = cross_entropy_loss(predicts3, targets3, block_rows=8, block_cols=128)
    jax.block_until_ready(loss3)
    ref3 = _reference(predicts3, targets3)
    assert jnp.allclose(loss3, ref3, rtol=1e-5, atol=1e-5), (loss3, ref3)

    print("KERNEL_OK")
</pallas_src>

<mosaic_0001>
module attributes {stable_mosaic.version = 11 : i64} {
  func.func @_ce_kernel(%arg0: i32, %arg1: i32, %arg2: memref<8x32xf32, #tpu.memory_space<vmem>>, %arg3: memref<8x1xi32, #tpu.memory_space<vmem>>, %arg4: memref<8x1xf32, #tpu.memory_space<vmem>>, %arg5: memref<8x1xf32, #tpu.memory_space<vmem>>, %arg6: memref<8x1xf32, #tpu.memory_space<vmem>>, %arg7: memref<8x1xf32, #tpu.memory_space<vmem>>) attributes {dimension_semantics = [#tpu.dimension_semantics<parallel>, #tpu.dimension_semantics<arbitrary>], iteration_bounds = array<i64: 1, 1>, scalar_prefetch = 0 : i64, scratch_operands = 3 : i64, tpu.core_type = #tpu.core_type<tc>, window_params = [{transform_indices = @transform_0, window_bounds = array<i64: 8, 32>}, {transform_indices = @transform_1, window_bounds = array<i64: 8, 1>}, {transform_indices = @transform_2, window_bounds = array<i64: 8, 1>}]} {
    %c0_i32 = arith.constant 0 : i32
    %0 = arith.cmpi eq, %arg1, %c0_i32 : i32
    %1 = arith.extui %0 : i1 to i32
    %c0_i32_0 = arith.constant 0 : i32
    %2 = arith.cmpi ne, %1, %c0_i32_0 : i32
    scf.if %2 {
      %cst_23 = arith.constant 0xFF800000 : f32
      %41 = vector.broadcast %cst_23 : f32 to vector<8x1xf32>
      %c0_24 = arith.constant 0 : index
      %c0_25 = arith.constant 0 : index
      %42 = vector.load %arg5[%c0_24, %c0_25] : memref<8x1xf32, #tpu.memory_space<vmem>>, vector<8x1xf32>
      tpu.vector_store %arg5[%c0_24, %c0_25], %41 {strides = array<i32>} : memref<8x1xf32, #tpu.memory_space<vmem>>, vector<8x1xf32>,
      %cst_26 = arith.constant 0.000000e+00 : f32
      %43 = vector.broadcast %cst_26 : f32 to vector<8x1xf32>
      %c0_27 = arith.constant 0 : index
      %c0_28 = arith.constant 0 : index
      %44 = vector.load %arg6[%c0_27, %c0_28] : memref<8x1xf32, #tpu.memory_space<vmem>>, vector<8x1xf32>
      tpu.vector_store %arg6[%c0_27, %c0_28], %43 {strides = array<i32>} : memref<8x1xf32, #tpu.memory_space<vmem>>, vector<8x1xf32>,
      %cst_29 = arith.constant 0.000000e+00 : f32
      %45 = vector.broadcast %cst_29 : f32 to vector<8x1xf32>
      %c0_30 = arith.constant 0 : index
      %c0_31 = arith.constant 0 : index
      %46 = vector.load %arg7[%c0_30, %c0_31] : memref<8x1xf32, #tpu.memory_space<vmem>>, vector<8x1xf32>
      tpu.vector_store %arg7[%c0_30, %c0_31], %45 {strides = array<i32>} : memref<8x1xf32, #tpu.memory_space<vmem>>, vector<8x1xf32>,
    } else {
    }
    %c0 = arith.constant 0 : index
    %c0_1 = arith.constant 0 : index
    %3 = vector.load %arg2[%c0, %c0_1] : memref<8x32xf32, #tpu.memory_space<vmem>>, vector<8x32xf32>
    %c0_2 = arith.constant 0 : index
    %c0_3 = arith.constant 0 : index
    %4 = vector.load %arg3[%c0_2, %c0_3] : memref<8x1xi32, #tpu.memory_space<vmem>>, vector<8x1xi32>
    %5 = tpu.iota {dimensions = array<i32: 1>} : vector<8x32xi32>
    %c32_i32 = arith.constant 32 : i32
    %6 = arith.muli %arg1, %c32_i32 : i32
    %7 = vector.broadcast %6 : i32 to vector<8x32xi32>
    %8 = arith.addi %5, %7 : vector<8x32xi32>
    %c32_i32_4 = arith.constant 32 : i32
    %9 = vector.broadcast %c32_i32_4 : i32 to vector<8x32xi32>
    %10 = arith.cmpi slt, %8, %9 : vector<8x32xi32>
    %cst = arith.constant 0xFF800000 : f32
    %11 = vector.broadcast %cst : f32 to vector<8x32xf32>
    %12 = arith.select %10, %3, %11 : vector<8x32xi1>, vector<8x32xf32>
    %c0_5 = arith.constant 0 : index
    %c0_6 = arith.constant 0 : index
    %13 = vector.load %arg5[%c0_5, %c0_6] : memref<8x1xf32, #tpu.memory_space<vmem>>, vector<8x1xf32>
    %cst_7 = arith.constant dense<0xFF800000> : vector<8xf32>
    %14 = vector.multi_reduction <maximumf>, %12, %cst_7 [1] : vector<8x32xf32> to vector<8xf32>
    %15 = vector.shape_cast %14 : vector<8xf32> to vector<8x1xf32>
    %16 = arith.maximumf %13, %15 : vector<8x1xf32>
    %17 = arith.subf %13, %16 : vector<8x1xf32>
    %18 = math.exp %17 : vector<8x1xf32>
    %c0_8 = arith.constant 0 : index
    %c0_9 = arith.constant 0 : index
    %19 = vector.load %arg6[%c0_8, %c0_9] : memref<8x1xf32, #tpu.memory_space<vmem>>, vector<8x1xf32>
    %20 = arith.mulf %18, %19 : vector<8x1xf32>
    %21 = vector.broadcast %16 : vector<8x1xf32> to vector<8x32xf32>
    %22 = arith.subf %12, %21 : vector<8x32xf32>
    %23 = math.exp %22 : vector<8x32xf32>
    %cst_10 = arith.constant dense<0.000000e+00> : vector<8xf32>
    %24 = vector.multi_reduction <add>, %23, %cst_10 [1] : vector<8x32xf32> to vector<8xf32>
    %25 = vector.shape_cast %24 : vector<8xf32> to vector<8x1xf32>
    %26 = arith.addf %20, %25 : vector<8x1xf32>
    %c0_11 = arith.constant 0 : index
    %c0_12 = arith.constant 0 : index
    %27 = vector.load %arg6[%c0_11, %c0_12] : memref<8x1xf32, #tpu.memory_space<vmem>>, vector<8x1xf32>
    tpu.vector_store %arg6[%c0_11, %c0_12], %26 {strides = array<i32>} : memref<8x1xf32, #tpu.memory_space<vmem>>, vector<8x1xf32>,
    %c0_13 = arith.constant 0 : index
    %c0_14 = arith.constant 0 : index
    %28 = vector.load %arg5[%c0_13, %c0_14] : memref<8x1xf32, #tpu.memory_space<vmem>>, vector<8x1xf32>
    tpu.vector_store %arg5[%c0_13, %c0_14], %16 {strides = array<i32>} : memref<8x1xf32, #tpu.memory_space<vmem>>, vector<8x1xf32>,
    %c0_15 = arith.constant 0 : index
    %c0_16 = arith.constant 0 : index
    %29 = vector.load %arg7[%c0_15, %c0_16] : memref<8x1xf32, #tpu.memory_space<vmem>>, vector<8x1xf32>
    %30 = vector.broadcast %4 : vector<8x1xi32> to vector<8x32xi32>
    %31 = arith.cmpi eq, %8, %30 : vector<8x32xi32>
    %cst_17 = arith.constant 0.000000e+00 : f32
    %32 = vector.broadcast %cst_17 : f32 to vector<8x32xf32>
    %33 = arith.select %31, %3, %32 : vector<8x32xi1>, vector<8x32xf32>
    %cst_18 = arith.constant dense<0.000000e+00> : vector<8xf32>
    %34 = vector.multi_reduction <add>, %33, %cst_18 [1] : vector<8x32xf32> to vector<8xf32>
    %35 = vector.shape_cast %34 : vector<8xf32> to vector<8x1xf32>
    %36 = arith.addf %29, %35 : vector<8x1xf32>
    %c0_19 = arith.constant 0 : index
    %c0_20 = arith.constant 0 : index
    %37 = vector.load %arg7[%c0_19, %c0_20] : memref<8x1xf32, #tpu.memory_space<vmem>>, vector<8x1xf32>
    tpu.vector_store %arg7[%c0_19, %c0_20], %36 {strides = array<i32>} : memref<8x1xf32, #tpu.memory_space<vmem>>, vector<8x1xf32>,
    %c0_i32_21 = arith.constant 0 : i32
    %38 = arith.cmpi eq, %arg1, %c0_i32_21 : i32
    %39 = arith.extui %38 : i1 to i32
    %c0_i32_22 = arith.constant 0 : i32
    %40 = arith.cmpi ne, %39, %c0_i32_22 : i32
    scf.if %40 {
      %c0_23 = arith.constant 0 : index
      %c0_24 = arith.constant 0 : index
      %41 = vector.load %arg5[%c0_23, %c0_24] : memref<8x1xf32, #tpu.memory_space<vmem>>, vector<8x1xf32>
      %c0_25 = arith.constant 0 : index
      %c0_26 = arith.constant 0 : index
      %42 = vector.load %arg6[%c0_25, %c0_26] : memref<8x1xf32, #tpu.memory_space<vmem>>, vector<8x1xf32>
      %43 = math.log %42 : vector<8x1xf32>
      %44 = arith.addf %41, %43 : vector<8x1xf32>
      %c0_27 = arith.constant 0 : index
      %c0_28 = arith.constant 0 : index
      %45 = vector.load %arg7[%c0_27, %c0_28] : memref<8x1xf32, #tpu.memory_space<vmem>>, vector<8x1xf32>
      %46 = arith.subf %44, %45 : vector<8x1xf32>
      %47 = tpu.iota {dimensions = array<i32: 0>} : vector<8x1xi32>
      %c8_i32 = arith.constant 8 : i32
      %48 = arith.muli %arg0, %c8_i32 : i32
      %49 = vector.broadcast %48 : i32 to vector<8x1xi32>
      %50 = arith.addi %47, %49 : vector<8x1xi32>
      %c8_i32_29 = arith.constant 8 : i32
      %51 = vector.broadcast %c8_i32_29 : i32 to vector<8x1xi32>
      %52 = arith.cmpi slt, %50, %51 : vector<8x1xi32>
      %cst_30 = arith.constant 0.000000e+00 : f32
      %53 = vector.broadcast %cst_30 : f32 to vector<8x1xf32>
      %54 = arith.select %52, %46, %53 : vector<8x1xi1>, vector<8x1xf32>
      %c0_31 = arith.constant 0 : index
      %c0_32 = arith.constant 0 : index
      %55 = vector.load %arg4[%c0_31, %c0_32] : memref<8x1xf32, #tpu.memory_space<vmem>>, vector<8x1xf32>
      tpu.vector_store %arg4[%c0_31, %c0_32], %54 {strides = array<i32>} : memref<8x1xf32, #tpu.memory_space<vmem>>, vector<8x1xf32>,
    } else {
    }
    return
  }
  func.func @transform_0(%arg0: i32, %arg1: i32) -> (i32, i32) {
    %c0_i32 = arith.constant 0 : i32
    return %arg0, %arg1 : i32, i32
  }
  func.func @transform_1(%arg0: i32, %arg1: i32) -> (i32, i32) {
    %c0_i32 = arith.constant 0 : i32
    %c0_i32_0 = arith.constant 0 : i32
    return %arg0, %c0_i32 : i32, i32
  }
  func.func @transform_2(%arg0: i32, %arg1: i32) -> (i32, i32) {
    %c0_i32 = arith.constant 0 : i32
    %c0_i32_0 = arith.constant 0 : i32
    return %arg0, %c0_i32 : i32, i32
  }
}

</mosaic_0001>

<llo_original>
// kernel: tpu_custom_call.1
$region0: #{tpu_custom_call.1}
  #allocation0 [shape = 'u32[]', space=smem, size = 0x4, offset = 0x4, fixed_abs, tag = 'smem constant byte address 0x4 - core index']
  #allocation1 [shape = 'u32[144,128]{1,0:T(1,128)}', space=vmem, size = 0x12000, scoped, tag = 'internal scratch']
  #allocation2 [shape = 'f32[8,1]{1,0:T(8,128)}', space=vmem, size = 0x1000, scoped, tag = 'scratch operand']
  #allocation3 [shape = 'f32[8,1]{1,0:T(8,128)}', space=vmem, size = 0x1000, scoped, tag = 'scratch operand']
  #allocation4 [shape = 'f32[8,1]{1,0:T(8,128)}', space=vmem, size = 0x1000, scoped, tag = 'scratch operand']
  %s0 = inlined_call_operand.vmem [shape: f32[8,32], index: 0, kind: input, shape index: {}]
  %s1 = inlined_call_operand.vmem [shape: s32[8,1], index: 1, kind: input, shape index: {}]
  %s2 = inlined_call_operand.vmem [shape: f32[8,1], index: 2, kind: output, shape index: {}]
  %s3 = sld [smem:[#allocation0]]
  $region26: #{tpu_custom_call.1} parent=0
    _
  %s5 = ssub.s32 1, %s3
  %s6 = scalar_select 0, %s5, %s3
  // Predicated region
  $region2: #{tpu_custom_call.1} parent=0 // pred_check
    _
  $region3: #{tpu_custom_call.1} parent=0 // pred_check_branch
    %8 = sbr.rel (0) target = $region5
  $region4: #{tpu_custom_call.1} parent=0 // pred_region
    _
  $region5: #{tpu_custom_call.1} parent=0 // pred_fallthru
    _
  // Predicated region
  $region6: #{tpu_custom_call.1} parent=0 // pred_check
    _
  $region7: #{tpu_custom_call.1} parent=0 // pred_check_branch
    %10 = sbr.rel (0) target = $region9
  $region8: #{tpu_custom_call.1} parent=0 // pred_region
    _
  $region9: #{tpu_custom_call.1} parent=0 // pred_fallthru
    _
  %p11 = scmp.eq.s32.totalorder 0, 0
  // Predicated region
  $region10: #{tpu_custom_call.1} parent=0 // pred_check
    %p12 = pneg %p11
  $region11: #{tpu_custom_call.1} parent=0 // pred_check_branch
    %14 = sbr.rel (%p12) target = $region13
  $region12: #{tpu_custom_call.1} parent=0 // pred_region
    %vm15 = vcmask 7168
    %16 = vst.msk [vmem:[#allocation2] sm:$0xff] %vm15, -inf
    %17 = vst.msk [vmem:[#allocation3] sm:$0xff] %vm15, 0.0
    %18 = vst.msk [vmem:[#allocation4] sm:$0xff] %vm15, 0.0
  $region13: #{tpu_custom_call.1} parent=0 // pred_fallthru
    _
  %v19 = vld [vmem:[%s0] sm:$0xff]
  %v20 = vld [vmem:[%s1] sm:$0xff]
  %v21 = vlaneseq
  %v22 = vand.u32 %v21, 127
  %s23 = smul.u32 0, 32
  %v24 = vstv %s23
  %v25 = vadd.s32 %v22, %v24
  %vm26 = vcmp.lt.s32.totalorder %v25, 32
  %v27 = vsel %vm26, %v19, -inf
  %v28 = vld [vmem:[#allocation2] sm:$0xff]
  %vm29 = vcmask 261120
  %v30 = vsel %vm29, %v27, -inf
  %31 = vmax.xlane.f32.xlu0 %v30
  %v32 = vpop.xlane.xlu0 %31
  %v33 = vmax.f32 %v28, %v32
  %v34 = vsub.f32 %v28, %v33
  %v35 = vmul.f32 %v34, 1.442695
  %v36 = vpow.pop %v35
  %v37 = vld [vmem:[#allocation3] sm:$0xff]
  %v38 = vmul.f32 %v36, %v37
  %40 = vset.pattern.permute.xlu0 0
  %41 = vperm.xlu0 %40, %v33
  %v42 = vpop.permute.xlu0 %41
  %v44 = vsub.f32 %v27, %v42
  %v45 = vmul.f32 %v44, 1.442695
  %v46 = vpow.pop %v45
  %v47 = vsel %vm29, %v46, 0.0
  %48 = vadd.xlane.f32.xlu0 %v47
  %v49 = vpop.xlane.xlu0 %48
  %v50 = vadd.f32 %v38, %v49
  %vm51 = vcmask 7168
  %52 = vst.msk [vmem:[#allocation3] sm:$0xff] %vm51, %v50
  %53 = vst.msk [vmem:[#allocation2] sm:$0xff] %vm51, %v33
  %v54 = vld [vmem:[#allocation4] sm:$0xff]
  %55 = vset.pattern.permute.xlu0 0
  %56 = vperm.xlu0 %55, %v20
  %v57 = vpop.permute.xlu0 %56
  %vm58 = vcmp.eq.s32.totalorder %v25, %v57
  %v59 = vsel %vm58, %v19, 0.0
  %v60 = vsel %vm29, %v59, 0.0
  %61 = vadd.xlane.f32.xlu0 %v60
  %v62 = vpop.xlane.xlu0 %61
  %v63 = vadd.f32 %v54, %v62
  %64 = vst.msk [vmem:[#allocation4] sm:$0xff] %vm51, %v63
  // Predicated region
  $region14: #{tpu_custom_call.1} parent=0 // pred_check
    %p65 = pneg %p11
  $region15: #{tpu_custom_call.1} parent=0 // pred_check_branch
    %67 = sbr.rel (%p65) target = $region17
  $region16: #{tpu_custom_call.1} parent=0 // pred_region
    %v68 = vld [vmem:[#allocation2] sm:$0xff]
    %v69 = vld [vmem:[#allocation3] sm:$0xff]
    %v70 = vlog2.pop %v69
    %v71 = vmul.f32 %v70, 0.6931472
    %v72 = vadd.f32 %v68, %v71
    %v73 = vld [vmem:[#allocation4] sm:$0xff]
    %v74 = vsub.f32 %v72, %v73
    %v75 = vlaneseq
    %v76 = vshrl.u32 %v75, 7
    %s77 = smul.u32 0, 8
    %v78 = vstv %s77
    %v79 = vadd.s32 %v76, %v78
    %vm80 = vcmp.lt.s32.totalorder %v79, 8
    %v81 = vsel %vm80, %v74, 0.0
    %82 = vst.msk [vmem:[%s2] sm:$0xff] %vm51, %v81
  $region17: #{tpu_custom_call.1} parent=0 // pred_fallthru
    _
  // Predicated region
  $region18: #{tpu_custom_call.1} parent=0 // pred_check
    _
  $region19: #{tpu_custom_call.1} parent=0 // pred_check_branch
    %84 = sbr.rel (0) target = $region21
  $region20: #{tpu_custom_call.1} parent=0 // pred_region
    _
  $region21: #{tpu_custom_call.1} parent=0 // pred_fallthru
    _
  // Predicated region
  $region22: #{tpu_custom_call.1} parent=0 // pred_check
    _
  $region23: #{tpu_custom_call.1} parent=0 // pred_check_branch
    %86 = sbr.rel (0) target = $region25
  $region24: #{tpu_custom_call.1} parent=0 // pred_region
    _
  $region25: #{tpu_custom_call.1} parent=0 // pred_fallthru
    _

</llo_original>
